<compile_context>
chip_gen: v6e
topology: v6e:2x2x1
jax: 0.10.0
libtpu: 0.0.40
codegen_flags: <defaults>
</compile_context>

<pallas_src>
import functools

import jax
import jax.numpy as jnp
from jax.experimental import pallas as pl
from jax.experimental.pallas import tpu as pltpu

ALPHA = 1.0
GAMMA = 2.0

# VMEM working-set target used for tile sizing, and the scoped-VMEM limit cap.
# 48 MiB is safe on every generation (v7x has 64 MiB per TensorCore).
_VMEM_SIZING_TARGET = 36 * 1024 * 1024
_VMEM_LIMIT_CAP = 48 * 1024 * 1024


def _round_up(x, m):
    return ((x + m - 1) // m) * m


def _focal_partial_kernel(logits_ref, targets_ref, out_ref, *,
                          tile_rows, strip_rows, n_rows):
    """Per-tile partial sum of cross-entropy NLL over the valid rows of this tile.

    The (tile_rows, C) tile is processed in strips of `strip_rows` rows so that
    full-width f32 temporaries (upcast, x-m, exp, one-hot select) stay bounded
    by the strip size rather than the tile size.
    """
    i = pl.program_id(0)
    out_ref[...] = jnp.zeros_like(out_ref)

    c = logits_ref.shape[1]
    # (1, C) lane iota; the compare below broadcasts it against (strip, 1)
    # targets, avoiding a full (rows, C) int32 iota temp.
    cls = jax.lax.broadcasted_iota(jnp.int32, (1, c), 1)

    n_strips = tile_rows // strip_rows

    @pl.loop(0, n_strips)
    def _(s):
        r0 = pl.multiple_of(s * strip_rows, strip_rows)
        row0 = i * tile_rows + r0

        @pl.when(row0 < n_rows)  # skip strips that are entirely past the data
        def _():
            x = logits_ref[pl.ds(r0, strip_rows), :].astype(jnp.float32)
            t = targets_ref[pl.ds(r0, strip_rows), :]            # (strip, 1) i32

            # Numerically stable log-sum-exp per row.
            m = jnp.max(x, axis=-1, keepdims=True)               # (strip, 1)
            lse = m + jnp.log(jnp.sum(jnp.exp(x - m), axis=-1, keepdims=True))

            # Target logit via lane-wise one-hot select (no dynamic gather).
            tgt = jnp.sum(jnp.where(cls == t, x, 0.0), axis=-1, keepdims=True)

            # Mask rows past the true N (ragged last block / last strip); this
            # also discards any garbage in the un-DMA'd tail of a partial block.
            rows = row0 + jax.lax.broadcasted_iota(
                jnp.int32, (strip_rows, 1), 0)
            nll = jnp.where(rows < n_rows, lse - tgt, 0.0)        # (strip, 1)

            out_ref[...] += jnp.broadcast_to(jnp.sum(nll), out_ref.shape)


def focal_loss(logits, targets, alpha=ALPHA, gamma=GAMMA, reduce=True,
               max_tile_rows=16384):
    """logits: (N, C) float (f32 or bf16); targets: (N,) int class ids. Scalar f32."""
    n, c = logits.shape
    targets2d = targets.astype(jnp.int32).reshape(n, 1)

    c_lanes = _round_up(c, 128)                       # lane-padded class width
    in_itemsize = jnp.dtype(logits.dtype).itemsize    # DMA tile uses input dtype

    user_cap = max(8, _round_up(min(int(max_tile_rows), n), 8))

    # --- strip sizing: bound in-strip temps (~5 full-width f32 temps plus a
    # handful of (rows, 1) lane-padded temps) to ~1/3 of the VMEM target. ---
    per_strip_row_tmp = 5 * c_lanes * 4 + 6 * 128 * 4
    strip_rows = 512
    while strip_rows > 8 and strip_rows * per_strip_row_tmp > _VMEM_SIZING_TARGET // 3:
        strip_rows //= 2
    strip_rows = min(strip_rows, user_cap)            # both multiples of 8
    strip_tmp_bytes = strip_rows * per_strip_row_tmp

    # --- tile sizing: per-row streaming cost = double-buffered logits DMA tile
    # (input dtype) + double-buffered (tr,1) int32 targets, which lane-pad to
    # (tr,128) in VMEM. ---
    row_bytes = 2 * c_lanes * in_itemsize + 2 * 128 * 4
    budget_rows = max(strip_rows,
                      (_VMEM_SIZING_TARGET - strip_tmp_bytes) // row_bytes)
    tr = min(budget_rows, user_cap, _round_up(n, strip_rows))
    tr = max(strip_rows, (tr // strip_rows) * strip_rows)
    g = pl.cdiv(n, tr)

    # Megacore balance (v7x): the single grid axis is "parallel", so make sure
    # there are at least 2 grid steps when the problem is splittable.
    if g == 1 and n > strip_rows:
        tr = _round_up(-(-n // 2), strip_rows)
        g = pl.cdiv(n, tr)

    vmem_est = tr * row_bytes + strip_tmp_bytes + 2 * 8 * 128 * 4
    vmem_bytes = int(min(_VMEM_LIMIT_CAP, vmem_est + 8 * 1024 * 1024))

    kernel = functools.partial(_focal_partial_kernel, tile_rows=tr,
                               strip_rows=strip_rows, n_rows=n)

    partials = pl.pallas_call(
        kernel,
        out_shape=jax.ShapeDtypeStruct((g, 8, 128), jnp.float32),
        grid=(g,),
        in_specs=[
            pl.BlockSpec((tr, c), lambda i: (i, 0)),
            pl.BlockSpec((tr, 1), lambda i: (i, 0)),
        ],
        out_specs=pl.BlockSpec((1, 8, 128), lambda i: (i, 0, 0)),
        compiler_params=pltpu.CompilerParams(
            dimension_semantics=("parallel",),
            vmem_limit_bytes=vmem_bytes,
        ),
    )(logits, targets2d)

    # Tiny epilogue in plain JAX: mean CE -> scalar focal transform.
    bce = jnp.sum(partials[:, 0, 0]) / jnp.float32(n)
    pt = jnp.exp(-bce)
    one_minus_pt = 1.0 - pt
    if gamma == 2:
        mod = one_minus_pt * one_minus_pt           # explicit square, no pow chain
    else:
        mod = one_minus_pt ** gamma
    f_loss = alpha * mod * bce
    # reduce=True (module default): F_loss is already a scalar; mean is identity.
    return f_loss


def focal_loss_ref(logits, targets, alpha=ALPHA, gamma=GAMMA):
    # Pure-JAX reference for sanity checking.
    logp = jax.nn.log_softmax(logits.astype(jnp.float32), axis=-1)
    nll = -jnp.take_along_axis(logp, targets[:, None].astype(jnp.int32), axis=-1)[:, 0]
    bce = jnp.mean(nll)
    pt = jnp.exp(-bce)
    return alpha * (1.0 - pt) ** gamma * bce


if __name__ == "__main__":
    key = jax.random.PRNGKey(0)
    k1, k2, k3, k4, k5, k6 = jax.random.split(key, 6)

    # Small shape consistent with the module's (N, C) logits / (N,) targets.
    N, C = 8, 32
    logits = jax.random.normal(k1, (N, C), dtype=jnp.float32)
    targets = jax.random.randint(k2, (N,), 0, C, dtype=jnp.int32)

    out = focal_loss(logits, targets)
    out = jax.block_until_ready(out)
    ref = focal_loss_ref(logits, targets)
    assert jnp.allclose(out, ref, atol=1e-5, rtol=1e-5), (out, ref)

    # Multi-tile grid with a ragged (un-padded) last block: 5 tiles of 64 rows,
    # last tile has 44 valid rows handled purely by the in-kernel mask.
    N2, C2 = 300, 32
    logits2 = jax.random.normal(k3, (N2, C2), dtype=jnp.float32)
    targets2 = jax.random.randint(k4, (N2,), 0, C2, dtype=jnp.int32)

    out2 = focal_loss(logits2, targets2, max_tile_rows=64)
    out2 = jax.block_until_ready(out2)
    ref2 = focal_loss_ref(logits2, targets2)
    assert jnp.allclose(out2, ref2, atol=1e-5, rtol=1e-5), (out2, ref2)

    # Auto-sized tiles: exercises the multi-strip pl.loop, the pl.when skip of
    # fully-invalid strips, the megacore g>=2 split, and a partial last tile.
    N3, C3 = 1200, 64
    logits3 = jax.random.normal(k5, (N3, C3), dtype=jnp.float32)
    targets3 = jax.random.randint(k6, (N3,), 0, C3, dtype=jnp.int32)

    out3 = focal_loss(logits3, targets3)
    out3 = jax.block_until_ready(out3)
    ref3 = focal_loss_ref(logits3, targets3)
    assert jnp.allclose(out3, ref3, atol=1e-5, rtol=1e-5), (out3, ref3)

    print("KERNEL_OK")
</pallas_src>

<mosaic_0001>
module attributes {stable_mosaic.version = 11 : i64} {
  func.func @_focal_partial_kernel(%arg0: i32, %arg1: memref<8x32xf32, #tpu.memory_space<vmem>>, %arg2: memref<8x1xi32, #tpu.memory_space<vmem>>, %arg3: memref<1x8x128xf32, #tpu.memory_space<vmem>>) attributes {dimension_semantics = [#tpu.dimension_semantics<parallel>], iteration_bounds = array<i64: 1>, scalar_prefetch = 0 : i64, scratch_operands = 0 : i64, tpu.core_type = #tpu.core_type<tc>, window_params = [{transform_indices = @transform_0, window_bounds = array<i64: 8, 32>}, {transform_indices = @transform_1, window_bounds = array<i64: 8, 1>}, {transform_indices = @transform_2, window_bounds = array<i64: 1, 8, 128>}]} {
    %cst = arith.constant 0.000000e+00 : f32
    %0 = vector.broadcast %cst : f32 to vector<1x8x128xf32>
    %c0 = arith.constant 0 : index
    %c0_0 = arith.constant 0 : index
    %c0_1 = arith.constant 0 : index
    %1 = vector.load %arg3[%c0, %c0_0, %c0_1] : memref<1x8x128xf32, #tpu.memory_space<vmem>>, vector<1x8x128xf32>
    tpu.vector_store %arg3[%c0, %c0_0, %c0_1], %0 {strides = array<i32>} : memref<1x8x128xf32, #tpu.memory_space<vmem>>, vector<1x8x128xf32>,
    %2 = tpu.iota {dimensions = array<i32: 1>} : vector<1x32xi32>
    %c0_i32 = arith.constant 0 : i32
    %c1_i32 = arith.constant 1 : i32
    %3 = arith.muli %c0_i32, %c1_i32 : i32
    %c0_i32_2 = arith.constant 0 : i32
    %4 = arith.addi %c0_i32_2, %3 : i32
    %c8_i32 = arith.constant 8 : i32
    %5 = arith.muli %4, %c8_i32 : i32
    %6 = tpu.assume_multiple %5, 8 : i32
    %c8_i32_3 = arith.constant 8 : i32
    %7 = arith.muli %arg0, %c8_i32_3 : i32
    %8 = arith.addi %7, %6 : i32
    %c8_i32_4 = arith.constant 8 : i32
    %9 = arith.cmpi slt, %8, %c8_i32_4 : i32
    %10 = arith.extui %9 : i1 to i32
    %c0_i32_5 = arith.constant 0 : i32
    %11 = arith.cmpi ne, %10, %c0_i32_5 : i32
    scf.if %11 {
      %12 = arith.index_cast %6 : i32 to index
      %c0_7 = arith.constant 0 : index
      %13 = vector.load %arg1[%12, %c0_7] : memref<8x32xf32, #tpu.memory_space<vmem>>, vector<8x32xf32>
      %14 = arith.index_cast %6 : i32 to index
      %c0_8 = arith.constant 0 : index
      %15 = vector.load %arg2[%14, %c0_8] : memref<8x1xi32, #tpu.memory_space<vmem>>, vector<8x1xi32>
      %cst_9 = arith.constant dense<0xFF800000> : vector<8xf32>
      %16 = vector.multi_reduction <maximumf>, %13, %cst_9 [1] : vector<8x32xf32> to vector<8xf32>
      %17 = vector.shape_cast %16 : vector<8xf32> to vector<8x1xf32>
      %18 = vector.broadcast %17 : vector<8x1xf32> to vector<8x32xf32>
      %19 = arith.subf %13, %18 : vector<8x32xf32>
      %20 = math.exp %19 : vector<8x32xf32>
      %cst_10 = arith.constant dense<0.000000e+00> : vector<8xf32>
      %21 = vector.multi_reduction <add>, %20, %cst_10 [1] : vector<8x32xf32> to vector<8xf32>
      %22 = vector.shape_cast %21 : vector<8xf32> to vector<8x1xf32>
      %23 = math.log %22 : vector<8x1xf32>
      %24 = arith.addf %17, %23 : vector<8x1xf32>
      %25 = vector.broadcast %2 : vector<1x32xi32> to vector<8x32xi32>
      %26 = vector.broadcast %15 : vector<8x1xi32> to vector<8x32xi32>
      %27 = arith.cmpi eq, %25, %26 : vector<8x32xi32>
      %cst_11 = arith.constant 0.000000e+00 : f32
      %28 = vector.broadcast %cst_11 : f32 to vector<8x32xf32>
      %29 = arith.select %27, %13, %28 : vector<8x32xi1>, vector<8x32xf32>
      %cst_12 = arith.constant dense<0.000000e+00> : vector<8xf32>
      %30 = vector.multi_reduction <add>, %29, %cst_12 [1] : vector<8x32xf32> to vector<8xf32>
      %31 = vector.shape_cast %30 : vector<8xf32> to vector<8x1xf32>
      %32 = tpu.iota {dimensions = array<i32: 0>} : vector<8x1xi32>
      %33 = vector.broadcast %8 : i32 to vector<8x1xi32>
      %34 = arith.addi %33, %32 : vector<8x1xi32>
      %c8_i32_13 = arith.constant 8 : i32
      %35 = vector.broadcast %c8_i32_13 : i32 to vector<8x1xi32>
      %36 = arith.cmpi slt, %34, %35 : vector<8x1xi32>
      %37 = arith.subf %24, %31 : vector<8x1xf32>
      %cst_14 = arith.constant 0.000000e+00 : f32
      %38 = vector.broadcast %cst_14 : f32 to vector<8x1xf32>
      %39 = arith.select %36, %37, %38 : vector<8x1xi1>, vector<8x1xf32>
      %c0_15 = arith.constant 0 : index
      %c0_16 = arith.constant 0 : index
      %c0_17 = arith.constant 0 : index
      %40 = vector.load %arg3[%c0_15, %c0_16, %c0_17] : memref<1x8x128xf32, #tpu.memory_space<vmem>>, vector<1x8x128xf32>
      %41 = vector.shape_cast %39 : vector<8x1xf32> to vector<1x8x1xf32>
      %cst_18 = arith.constant dense<0.000000e+00> : vector<1xf32>
      %42 = vector.multi_reduction <add>, %41, %cst_18 [1, 2] : vector<1x8x1xf32> to vector<1xf32>
      %43 = vector.shape_cast %42 : vector<1xf32> to vector<1x1x1xf32>
      %44 = vector.extract %43[0, 0, 0] : f32 from vector<1x1x1xf32>
      %45 = vector.broadcast %44 : f32 to vector<1x8x128xf32>
      %46 = arith.addf %40, %45 : vector<1x8x128xf32>
      %c0_19 = arith.constant 0 : index
      %c0_20 = arith.constant 0 : index
      %c0_21 = arith.constant 0 : index
      %47 = vector.load %arg3[%c0_19, %c0_20, %c0_21] : memref<1x8x128xf32, #tpu.memory_space<vmem>>, vector<1x8x128xf32>
      tpu.vector_store %arg3[%c0_19, %c0_20, %c0_21], %46 {strides = array<i32>} : memref<1x8x128xf32, #tpu.memory_space<vmem>>, vector<1x8x128xf32>,
    } else {
    }
    %c1_i32_6 = arith.constant 1 : i32
    return
  }
  func.func @transform_0(%arg0: i32) -> (i32, i32) {
    %c0_i32 = arith.constant 0 : i32
    %c0_i32_0 = arith.constant 0 : i32
    return %arg0, %c0_i32 : i32, i32
  }
  func.func @transform_1(%arg0: i32) -> (i32, i32) {
    %c0_i32 = arith.constant 0 : i32
    %c0_i32_0 = arith.constant 0 : i32
    return %arg0, %c0_i32 : i32, i32
  }
  func.func @transform_2(%arg0: i32) -> (i32, i32, i32) {
    %c0_i32 = arith.constant 0 : i32
    %c0_i32_0 = arith.constant 0 : i32
    %c0_i32_1 = arith.constant 0 : i32
    return %arg0, %c0_i32, %c0_i32_0 : i32, i32, i32
  }
}

</mosaic_0001>

<llo_original>
// kernel: tpu_custom_call.1
$region0: #{tpu_custom_call.1}
  #allocation0 [shape = 'u32[]', space=smem, size = 0x4, offset = 0x4, fixed_abs, tag = 'smem constant byte address 0x4 - core index']
  #allocation1 [shape = 'u32[144,128]{1,0:T(1,128)}', space=vmem, size = 0x12000, scoped, tag = 'internal scratch']
  %s0 = inlined_call_operand.vmem [shape: f32[8,32], index: 0, kind: input, shape index: {}]
  %s1 = inlined_call_operand.vmem [shape: s32[8,1], index: 1, kind: input, shape index: {}]
  %s2 = inlined_call_operand.hbm [shape: f32[1,8,128], index: 2, kind: output, shape index: {}]
  %s3 = sld [smem:[#allocation0]]
  $region22: #{tpu_custom_call.1} parent=0
    _
  %s5 = ssub.s32 1, %s3
  %s6 = scalar_select 0, %s5, %s3
  $region1: #{tpu_custom_call.1} parent=0
    #allocation2 [shape = 'u8[4096]{0}', space=vmem, size = 0x1000, scoped, tag = 'output window, operand 0, single buffered']
    #allocation3 [shape = 's32[1]{0}', space=sflag, size = 0x4, scoped, tag = 'scoped memory for tpu_custom_call.1']
    %7 = vsyncpa [#allocation3], 0
    // Predicated region
    $region2: #{tpu_custom_call.1} parent=1 // pred_check
      _
    $region3: #{tpu_custom_call.1} parent=1 // pred_check_branch
      %9 = sbr.rel (0) target = $region5
    $region4: #{tpu_custom_call.1} parent=1 // pred_region
      _
    $region5: #{tpu_custom_call.1} parent=1 // pred_fallthru
      _
    // Predicated region
    $region6: #{tpu_custom_call.1} parent=1 // pred_check
      _
    $region7: #{tpu_custom_call.1} parent=1 // pred_check_branch
      %11 = sbr.rel (0) target = $region9
    $region8: #{tpu_custom_call.1} parent=1 // pred_region
      _
    $region9: #{tpu_custom_call.1} parent=1 // pred_fallthru
      _
    %12 = vst [vmem:[#allocation2] sm:$0xff] 0.0
    %v13 = vlaneseq
    %v14 = vand.u32 %v13, 127
    %s15 = smul.u32 0, 8
    %s16 = sadd.s32 %s15, 0
    %p17 = scmp.lt.s32.totalorder %s16, 8
    // Predicated region
    $region10: #{tpu_custom_call.1} parent=1 // pred_check
      %p18 = pneg %p17
    $region11: #{tpu_custom_call.1} parent=1 // pred_check_branch
      %20 = sbr.rel (%p18) target = $region13
    $region12: #{tpu_custom_call.1} parent=1 // pred_region
      %v21 = vld [vmem:[%s0] sm:$0xff]
      %v22 = vld [vmem:[%s1] sm:$0xff]
      %vm23 = vcmask 261120
      %v24 = vsel %vm23, %v21, -inf
      %25 = vmax.xlane.f32.xlu0 %v24
      %v26 = vpop.xlane.xlu0 %25
      %v27 = vsub.f32 %v21, %v26
      %v28 = vmul.f32 %v27, 1.442695
      %v29 = vpow.pop %v28
      %v30 = vsel %vm23, %v29, 0.0
      %31 = vadd.xlane.f32.xlu0 %v30
      %v32 = vpop.xlane.xlu0 %31
      %v33 = vlog2.pop %v32
      %v34 = vmul.f32 %v33, 0.6931472
      %v35 = vadd.f32 %v26, %v34
      %36 = vset.pattern.permute.xlu0 0
      %37 = vperm.xlu0 %36, %v22
      %v38 = vpop.permute.xlu0 %37
      %vm39 = vcmp.eq.s32.totalorder %v14, %v38
      %v40 = vsel %vm39, %v21, 0.0
      %v41 = vsel %vm23, %v40, 0.0
      %42 = vadd.xlane.f32.xlu0 %v41
      %v43 = vpop.xlane.xlu0 %42
      %v44 = vlaneseq
      %v45 = vshrl.u32 %v44, 7
      %v46 = vstv %s16
      %v47 = vadd.s32 %v46, %v45
      %vm48 = vcmp.lt.s32.totalorder %v47, 8
      %v49 = vsub.f32 %v35, %v43
      %v50 = vsel %vm48, %v49, 0.0
      %v51 = vld [vmem:[#allocation2] sm:$0xff]
      %vm52 = vcmask 7168
      %v53 = vsel %vm52, %v50, 0.0
      %54 = vadd.xlane.f32.xlu0 %v53
      %v55 = vpop.xlane.xlu0 %54
      %v56 = vrot.slane %v55, 4
      %v57 = vadd.f32 %v55, %v56
      %v58 = vrot.slane %v57, 2
      %v59 = vadd.f32 %v57, %v58
      %v60 = vrot.slane %v59, 1
      %v61 = vadd.f32 %v59, %v60
      %s62 = vtos %v61
      %v63 = vstv %s62
      %v64 = vadd.f32 %v51, %v63
      %65 = vst [vmem:[#allocation2] sm:$0xff] %v64
    $region13: #{tpu_custom_call.1} parent=1 // pred_fallthru
      _
    // Predicated region
    $region14: #{tpu_custom_call.1} parent=1 // pred_check
      _
    $region15: #{tpu_custom_call.1} parent=1 // pred_check_branch
      %67 = sbr.rel (0) target = $region17
    $region16: #{tpu_custom_call.1} parent=1 // pred_region
      %s69 = ssub.s32 128, 128
      %70 = vsyncadd [#allocation3], %s69
      %s72 = sshll.u32 [#allocation2], 4
      %s73 = int_to_ptr.vmem [resolvable:$true] %s72
      %75 = dma.vmem_to_hbm [thread:$0]  %s73, 128, %s2, [#allocation3]
    $region17: #{tpu_custom_call.1} parent=1 // pred_fallthru
      _
    // Predicated region
    $region18: #{tpu_custom_call.1} parent=1 // pred_check
      _
    $region19: #{tpu_custom_call.1} parent=1 // pred_check_branch
      %77 = sbr.rel (0) target = $region21
    $region20: #{tpu_custom_call.1} parent=1 // pred_region
      %78 = dma.done [#allocation3], 128
    $region21: #{tpu_custom_call.1} parent=1 // pred_fallthru
      _
    %79 = vsyncpa [#allocation3], 1

</llo_original>
